<compile_context>
chip_gen: v5e
topology: v5e:2x2
jax: 0.10.0
libtpu: 0.0.40
codegen_flags: <defaults>
</compile_context>

<pallas_src>
import numpy as np
import jax
import jax.numpy as jnp
from jax.experimental import pallas as pl
from jax.experimental.pallas import tpu as pltpu

LN_EPS = 1e-12                      # espnet LayerNorm eps


def _round_up(v, m):
    return int(-(-int(v) // int(m)) * int(m))


def _tpu_config():
    """Per-generation tile preferences and VMEM limits (perf only, not correctness)."""
    try:
        kind = jax.devices()[0].device_kind.lower()
    except Exception:
        kind = ""
    if "v7" in kind:     # 2 TCs / chip, 64 MiB VMEM per core
        return dict(tc_pref=256, tl_cap=1024, vmem=48 * 1024 * 1024, two_core=True)
    if "v6" in kind:     # 1 TC, 128 MiB VMEM, 2x256^2 MXU
        return dict(tc_pref=256, tl_cap=2048, vmem=96 * 1024 * 1024, two_core=False)
    if "v5" in kind:     # v5e: 4x128^2 MXU, single vst slot -> moderate tiles
        return dict(tc_pref=128, tl_cap=1024, vmem=64 * 1024 * 1024, two_core=False)
    return dict(tc_pref=128, tl_cap=1024, vmem=32 * 1024 * 1024, two_core=False)


def _choose_tl(L, cap, *, min_tiles=1):
    """Largest power-of-two L tile (multiple of 128) with <=1/8 zero-padding waste."""
    tl = max(128, int(cap))
    while tl > 128:
        lp = _round_up(L, tl)
        if (lp - L) * 8 <= lp:
            break
        tl //= 2
    tl = max(128, tl)
    while tl > 128 and _round_up(L, tl) // tl < min_tiles:   # v7x dual-core split
        tl //= 2
    return tl, _round_up(L, tl)


def _choose_tc(max_counts, pref, *, min_tiles=1):
    """Segment-count tile: sublane aligned, <=1/8 padding waste, MXU-M friendly."""
    tc = max(8, int(pref))
    while tc > 8:
        cp = _round_up(max_counts, tc)
        if (cp - max_counts) * 8 <= cp:
            break
        tc //= 2
    tc = max(8, tc)
    while tc > 8 and _round_up(max_counts, tc) // tc < min_tiles:  # v7x dual-core split
        tc //= 2
    return tc, _round_up(max_counts, tc)


# --------------------------------------------------------------------------------------
# Stage 1: fused  u = sigmoid(x @ w + b)  and  alpha = (u * x).astype(bf16)
# --------------------------------------------------------------------------------------
def _uma_weights_kernel(x_ref, w_ref, b_ref, alpha_ref, u_ref):
    x = x_ref[0]                                                    # (TL, D) f32
    w = w_ref[...]                                                  # (1, D)  f32
    # Dot product via VPU multiply + lane reduce (stage is HBM-bound; no N=1 MXU pass).
    logits = jnp.sum(x * w, axis=-1, keepdims=True) + b_ref[0, 0]   # (TL, 1)
    u = jax.nn.sigmoid(logits)                                      # EUP
    alpha_ref[0] = (u * x).astype(jnp.bfloat16)                     # bf16 MXU operand for stage 2
    u_ref[0] = u


def uma_weights_alpha(x, w_row, bias11, *, tl, vmem_limit):
    B, Lp, D = x.shape
    return pl.pallas_call(
        _uma_weights_kernel,
        out_shape=(
            jax.ShapeDtypeStruct((B, Lp, D), jnp.bfloat16),         # alpha = u * x
            jax.ShapeDtypeStruct((B, Lp, 1), jnp.float32),          # u
        ),
        grid=(B, Lp // tl),
        in_specs=[
            pl.BlockSpec((1, tl, D), lambda b, l: (b, l, 0)),
            pl.BlockSpec((1, D), lambda b, l: (0, 0)),
            pl.BlockSpec(memory_space=pltpu.MemorySpace.SMEM),      # scalar bias in SMEM
        ],
        out_specs=(
            pl.BlockSpec((1, tl, D), lambda b, l: (b, l, 0)),
            pl.BlockSpec((1, tl, 1), lambda b, l: (b, l, 0)),
        ),
        compiler_params=pltpu.CompilerParams(
            dimension_semantics=("parallel", "parallel"),
            vmem_limit_bytes=vmem_limit,
        ),
    )(x, w_row, bias11)


# --------------------------------------------------------------------------------------
# Stage 2: banded segment pooling + after_norm
#   out = LayerNorm( (M @ alpha) / clamp(den, 1e-6) )
#   M is built in-register from scalar-prefetched starts/ends; the L axis is a banded
#   reduction (data-dependent index_map + pl.when gating) with f32 VMEM accumulators.
# --------------------------------------------------------------------------------------
def seg_pool_norm(l0, nl, starts_v, ends_v, den_v, alpha, gamma_row, beta_row,
                  *, tc, tl, max_nl, vmem_limit):
    B, Cp, _ = starts_v.shape
    _, Lp, D = alpha.shape
    n_ct = Cp // tc
    last_l = max_nl - 1

    def kernel(l0_ref, nl_ref, s_ref, e_ref, den_ref, alpha_ref, g_ref, bt_ref,
               o_ref, num_acc):
        b = pl.program_id(0)
        c = pl.program_id(1)
        l = pl.program_id(2)

        @pl.when(l == 0)
        def _():
            num_acc[...] = jnp.zeros_like(num_acc)

        @pl.when(l < nl_ref[b, c])
        def _():
            li = l0_ref[b, c] + l                                   # actual L-tile index
            t = li * tl + jax.lax.broadcasted_iota(jnp.int32, (1, tl), 1)   # (1, TL)
            s = s_ref[0]                                            # (TC, 1) int32
            e = e_ref[0]                                            # (TC, 1) int32
            m = jnp.where(jnp.logical_and(t >= s, t < e), 1.0, 0.0).astype(jnp.bfloat16)
            # MXU: bf16 operands (mask is exact in bf16), f32 accumulation.
            num_acc[...] += jnp.dot(m, alpha_ref[0],
                                    preferred_element_type=jnp.float32)

        @pl.when(l == last_l)
        def _():
            den = jnp.maximum(den_ref[0], 1e-6)                     # clamp_(1e-06)
            y = num_acc[...] / den                                  # exact divide (finalize only)
            # after_norm: LayerNorm over the feature dim (f32 math)
            mean = jnp.mean(y, axis=-1, keepdims=True)
            var = jnp.mean(jnp.square(y - mean), axis=-1, keepdims=True)
            yhat = (y - mean) * jax.lax.rsqrt(var + LN_EPS)
            o_ref[0] = yhat * g_ref[...] + bt_ref[...]

    def alpha_map(b, c, l, l0_ref, nl_ref):
        # Banded, data-dependent L index; clamped (repeated) indices beyond the band
        # are never re-DMAed and their compute is skipped by the pl.when gate above.
        return (b, l0_ref[b, c] + jnp.minimum(l, nl_ref[b, c] - 1), 0)

    return pl.pallas_call(
        kernel,
        out_shape=jax.ShapeDtypeStruct((B, Cp, D), jnp.float32),
        grid_spec=pltpu.PrefetchScalarGridSpec(
            num_scalar_prefetch=2,
            grid=(B, n_ct, max_nl),
            in_specs=[
                pl.BlockSpec((1, tc, 1), lambda b, c, l, l0, nl: (b, c, 0)),   # starts
                pl.BlockSpec((1, tc, 1), lambda b, c, l, l0, nl: (b, c, 0)),   # ends
                pl.BlockSpec((1, tc, 1), lambda b, c, l, l0, nl: (b, c, 0)),   # den
                pl.BlockSpec((1, tl, D), alpha_map),                           # alpha (banded)
                pl.BlockSpec((1, D), lambda b, c, l, l0, nl: (0, 0)),          # gamma
                pl.BlockSpec((1, D), lambda b, c, l, l0, nl: (0, 0)),          # beta
            ],
            out_specs=pl.BlockSpec((1, tc, D), lambda b, c, l, l0, nl: (b, c, 0)),
            scratch_shapes=[pltpu.VMEM((tc, D), jnp.float32)],                 # numerator acc
        ),
        compiler_params=pltpu.CompilerParams(
            dimension_semantics=("parallel", "parallel", "arbitrary"),
            vmem_limit_bytes=vmem_limit,
        ),
    )(l0, nl, starts_v, ends_v, den_v, alpha, gamma_row, beta_row)


# --------------------------------------------------------------------------------------
# Parameters (torch-default style deterministic init)
# --------------------------------------------------------------------------------------
def init_uma_params(key, d):
    kw, kb = jax.random.split(key)
    bound = 1.0 / np.sqrt(d)
    w = jax.random.uniform(kw, (1, d), jnp.float32, -bound, bound)    # nn.Linear(d, 1).weight
    b = jax.random.uniform(kb, (1,), jnp.float32, -bound, bound)      # nn.Linear(d, 1).bias
    gamma = jnp.ones((d,), jnp.float32)                               # LayerNorm weight
    beta = jnp.zeros((d,), jnp.float32)                               # LayerNorm bias
    return dict(w=w, b=b, gamma=gamma, beta=beta)


# --------------------------------------------------------------------------------------
# Full forward (infer path)
# --------------------------------------------------------------------------------------
def uma_forward_infer(xs_pad, olens, params):
    # NOTE: like the PyTorch reference, olens is not used to restrict valley detection;
    # the new olens are the per-batch segment counts.
    B, L, D = xs_pad.shape
    cfg = _tpu_config()
    x = xs_pad.astype(jnp.float32)

    min_l_tiles = 2 if (cfg["two_core"] and B == 1) else 1
    TL, Lp = _choose_tl(L, cfg["tl_cap"], min_tiles=min_l_tiles)
    if Lp != L:
        x = jnp.pad(x, ((0, 0), (0, Lp - L), (0, 0)))

    w_row = params["w"].astype(jnp.float32).reshape(1, D)
    bias11 = params["b"].astype(jnp.float32).reshape(1, 1)

    # ---- Pallas stage 1 ----
    alpha_bf16, u_col = uma_weights_alpha(x, w_row, bias11, tl=TL, vmem_limit=cfg["vmem"])

    # ---- Single small D2H sync: the (B, L) f32 gate u.  All dynamic-shape bookkeeping
    # (torch.nonzero / torch.unique equivalents) is vectorized numpy on the host. ----
    # TODO(synk): torch.nonzero/torch.unique produce dynamic shapes; no static Pallas form.
    u_np = np.asarray(jax.device_get(u_col))[:, :L, 0]               # (B, L) f32

    valley = np.zeros((B, L), dtype=bool)
    if L >= 3:
        valley[:, 1:-1] = (u_np[:, 1:-1] < u_np[:, :-2]) & (u_np[:, 1:-1] < u_np[:, 2:])
    mask_start = valley.copy(); mask_start[:, 0] = True;  mask_start[:, -1] = False
    mask_end = valley.copy();   mask_end[:, 0] = False;   mask_end[:, -1] = True

    counts = mask_start.sum(axis=1).astype(np.int32)                 # segments per batch
    max_counts = int(counts.max())

    min_c_tiles = 2 if (cfg["two_core"] and B == 1) else 1
    TC, Cp = _choose_tc(max_counts, cfg["tc_pref"], min_tiles=min_c_tiles)

    # Left-compacted per-batch segment starts / ends (vectorized; no O(B*C*L) host work).
    order_s = np.argsort(~mask_start, axis=1, kind="stable")         # start positions first
    order_e = np.argsort(~mask_end, axis=1, kind="stable")
    take = min(Cp, L)
    starts_p = np.zeros((B, Cp), np.int64)
    ends_p = np.zeros((B, Cp), np.int64)
    starts_p[:, :take] = order_s[:, :take]
    ends_p[:, :take] = np.minimum(order_e[:, :take] + 2, L)          # +2 then clamp to L
    valid = np.arange(Cp)[None, :] < counts[:, None]
    starts_p = np.where(valid, starts_p, 0)
    ends_p = np.where(valid, ends_p, 0)

    # Per-segment denominator sum(u) via f64 prefix sums (exact at f32 level).
    cs = np.concatenate([np.zeros((B, 1)), np.cumsum(u_np.astype(np.float64), axis=1)],
                        axis=1)                                      # (B, L+1)
    den_np = np.take_along_axis(cs, ends_p, axis=1) - np.take_along_axis(cs, starts_p, axis=1)
    den_np = np.where(valid, den_np, 0.0).astype(np.float32)

    # Per-(batch, C-tile) contiguous L band (segments are sorted) for band skipping.
    n_ct = Cp // TC
    first = np.arange(n_ct) * TC
    has = counts[:, None] > first[None, :]
    last = np.minimum(np.maximum(counts[:, None] - 1, 0), first[None, :] + TC - 1)
    bidx = np.arange(B)[:, None]
    band_start = starts_p[bidx, np.broadcast_to(first[None, :], (B, n_ct))]
    band_end = ends_p[bidx, last]
    l0_np = np.where(has, band_start // TL, 0).astype(np.int32)
    l_last = np.where(has, np.maximum(band_end - 1, 0) // TL, 0)
    nl_np = np.where(has, l_last - l0_np + 1, 1).astype(np.int32)
    max_nl = int(nl_np.max())

    # ---- Tiny H2D uploads (a few KiB); no dense (B, Cp, Lp) mask is ever materialized ----
    starts_v = jnp.asarray(starts_p.reshape(B, Cp, 1), jnp.int32)
    ends_v = jnp.asarray(ends_p.reshape(B, Cp, 1), jnp.int32)
    den_v = jnp.asarray(den_np.reshape(B, Cp, 1), jnp.float32)
    l0_dev = jnp.asarray(l0_np)
    nl_dev = jnp.asarray(nl_np)

    # ---- Pallas stage 2 ----
    out_p = seg_pool_norm(
        l0_dev, nl_dev, starts_v, ends_v, den_v, alpha_bf16,
        params["gamma"].astype(jnp.float32).reshape(1, D),
        params["beta"].astype(jnp.float32).reshape(1, D),
        tc=TC, tl=TL, max_nl=max_nl, vmem_limit=cfg["vmem"])
    out = out_p[:, :max_counts, :]                                    # drop C padding

    olens_out = jnp.asarray(counts, jnp.int32)
    chunk_counts = None                                               # chunk_wize is False
    uma_weights = u_col[:, :L, :]                                     # (B, L, 1) as in torch
    flat_starts = np.concatenate([starts_p[bb, :counts[bb]] for bb in range(B)])
    flat_ends = np.concatenate([ends_p[bb, :counts[bb]] for bb in range(B)])
    return out, olens_out, (chunk_counts,
                            (uma_weights,
                             (jnp.asarray(flat_starts, jnp.int32),
                              jnp.asarray(flat_ends, jnp.int32))))


if __name__ == "__main__":
    B, L, D = 2, 16, 32
    key = jax.random.PRNGKey(0)
    kx, kp = jax.random.split(key)
    xs_pad = jax.random.normal(kx, (B, L, D), jnp.float32)
    olens = jnp.full((B,), L, jnp.int32)
    params = init_uma_params(kp, D)

    out, new_olens, states = uma_forward_infer(xs_pad, olens, params)
    jax.block_until_ready(out)
    jax.block_until_ready(new_olens)

    # ---- lightweight numpy reference check (mirrors UMA.forward_infer) ----
    out_np = np.asarray(out, np.float64)
    u_k = np.asarray(states[1][0], np.float64)[:, :, 0]               # kernel's uma weights
    x_np = np.asarray(xs_pad, np.float64)
    w_np = np.asarray(params["w"], np.float64).reshape(-1)
    b_np = float(np.asarray(params["b"])[0])
    g_np = np.asarray(params["gamma"], np.float64)
    be_np = np.asarray(params["beta"], np.float64)

    u_ref = 1.0 / (1.0 + np.exp(-(x_np @ w_np + b_np)))               # (B, L)
    assert np.max(np.abs(u_ref - u_k)) < 1e-4, "stage-1 sigmoid mismatch"

    valley = np.zeros((B, L), bool)
    valley[:, 1:-1] = (u_k[:, 1:-1] < u_k[:, :-2]) & (u_k[:, 1:-1] < u_k[:, 2:])
    ms = valley.copy(); ms[:, 0] = True; ms[:, -1] = False
    me = valley.copy(); me[:, 0] = False; me[:, -1] = True
    counts_ref = ms.sum(axis=1)
    mc = int(counts_ref.max())
    ref = np.zeros((B, mc, D))
    for bb in range(B):
        ss = np.nonzero(ms[bb])[0]
        ee = np.minimum(np.nonzero(me[bb])[0] + 2, L)
        for j, (s0, e0) in enumerate(zip(ss, ee)):
            useg = u_k[bb, s0:e0, None]
            num = (useg * x_np[bb, s0:e0]).sum(axis=0)
            den = max(useg.sum(), 1e-6)
            y = num / den
            mu = y.mean()
            var = ((y - mu) ** 2).mean()
            ref[bb, j] = (y - mu) / np.sqrt(var + 1e-12) * g_np + be_np
        ref[bb, counts_ref[bb]:] = be_np                              # padded rows -> beta
    assert out_np.shape == ref.shape, (out_np.shape, ref.shape)
    assert np.array_equal(np.asarray(new_olens), counts_ref.astype(np.int32))
    assert np.max(np.abs(out_np - ref)) < 5e-2, float(np.max(np.abs(out_np - ref)))

    assert out.ndim == 3 and out.shape[0] == B and out.shape[2] == D
    print("KERNEL_OK")
</pallas_src>

<mosaic_0001>
module attributes {stable_mosaic.version = 11 : i64} {
  func.func @_uma_weights_kernel(%arg0: i32, %arg1: i32, %arg2: memref<1x128x32xf32, #tpu.memory_space<vmem>>, %arg3: memref<1x32xf32, #tpu.memory_space<vmem>>, %arg4: memref<1x1xf32, #tpu.memory_space<smem>>, %arg5: memref<1x128x32xbf16, #tpu.memory_space<vmem>>, %arg6: memref<1x128x1xf32, #tpu.memory_space<vmem>>) attributes {dimension_semantics = [#tpu.dimension_semantics<parallel>, #tpu.dimension_semantics<parallel>], iteration_bounds = array<i64: 2, 1>, scalar_prefetch = 0 : i64, scratch_operands = 0 : i64, tpu.core_type = #tpu.core_type<tc>, window_params = [{transform_indices = @transform_0, window_bounds = array<i64: 1, 128, 32>}, {pipeline_mode = #tpu.pipeline_mode<synchronous>, transform_indices = @transform_1, window_bounds = array<i64: 1, 32>}, {transform_indices = @transform_2, window_bounds = array<i64: 1, 1>}, {transform_indices = @transform_3, window_bounds = array<i64: 1, 128, 32>}, {transform_indices = @transform_4, window_bounds = array<i64: 1, 128, 1>}]} {
    %c0 = arith.constant 0 : index
    %c0_0 = arith.constant 0 : index
    %c0_1 = arith.constant 0 : index
    %0 = vector.load %arg2[%c0, %c0_0, %c0_1] : memref<1x128x32xf32, #tpu.memory_space<vmem>>, vector<1x128x32xf32>
    %1 = vector.shape_cast %0 : vector<1x128x32xf32> to vector<128x32xf32>
    %c0_2 = arith.constant 0 : index
    %c0_3 = arith.constant 0 : index
    %2 = vector.load %arg3[%c0_2, %c0_3] : memref<1x32xf32, #tpu.memory_space<vmem>>, vector<1x32xf32>
    %3 = vector.broadcast %2 : vector<1x32xf32> to vector<128x32xf32>
    %4 = arith.mulf %1, %3 : vector<128x32xf32>
    %cst = arith.constant dense<0.000000e+00> : vector<128xf32>
    %5 = vector.multi_reduction <add>, %4, %cst [1] : vector<128x32xf32> to vector<128xf32>
    %6 = vector.shape_cast %5 : vector<128xf32> to vector<128x1xf32>
    %c0_4 = arith.constant 0 : index
    %c0_5 = arith.constant 0 : index
    %7 = memref.load %arg4[%c0_4, %c0_5] : memref<1x1xf32, #tpu.memory_space<smem>>
    %8 = vector.broadcast %7 : f32 to vector<128x1xf32>
    %9 = arith.addf %6, %8 : vector<128x1xf32>
    %10 = arith.negf %9 : vector<128x1xf32>
    %11 = math.exp %10 : vector<128x1xf32>
    %cst_6 = arith.constant 1.000000e+00 : f32
    %12 = vector.broadcast %cst_6 : f32 to vector<128x1xf32>
    %13 = arith.addf %12, %11 : vector<128x1xf32>
    %14 = arith.divf %12, %13 : vector<128x1xf32>
    %15 = vector.broadcast %14 : vector<128x1xf32> to vector<128x32xf32>
    %16 = arith.mulf %15, %1 : vector<128x32xf32>
    %17 = arith.truncf %16 : vector<128x32xf32> to vector<128x32xbf16>
    %c0_7 = arith.constant 0 : index
    %c0_8 = arith.constant 0 : index
    %c0_9 = arith.constant 0 : index
    %18 = vector.load %arg5[%c0_7, %c0_8, %c0_9] : memref<1x128x32xbf16, #tpu.memory_space<vmem>>, vector<1x128x32xbf16>
    %19 = vector.shape_cast %18 : vector<1x128x32xbf16> to vector<128x32xbf16>
    %20 = vector.shape_cast %17 : vector<128x32xbf16> to vector<1x128x32xbf16>
    tpu.vector_store %arg5[%c0_7, %c0_8, %c0_9], %20 {strides = array<i32>} : memref<1x128x32xbf16, #tpu.memory_space<vmem>>, vector<1x128x32xbf16>,
    %c0_10 = arith.constant 0 : index
    %c0_11 = arith.constant 0 : index
    %c0_12 = arith.constant 0 : index
    %21 = vector.load %arg6[%c0_10, %c0_11, %c0_12] : memref<1x128x1xf32, #tpu.memory_space<vmem>>, vector<1x128x1xf32>
    %22 = vector.shape_cast %21 : vector<1x128x1xf32> to vector<128x1xf32>
    %23 = vector.shape_cast %14 : vector<128x1xf32> to vector<1x128x1xf32>
    tpu.vector_store %arg6[%c0_10, %c0_11, %c0_12], %23 {strides = array<i32>} : memref<1x128x1xf32, #tpu.memory_space<vmem>>, vector<1x128x1xf32>,
    return
  }
  func.func @transform_0(%arg0: i32, %arg1: i32) -> (i32, i32, i32) {
    %c0_i32 = arith.constant 0 : i32
    %c0_i32_0 = arith.constant 0 : i32
    return %arg0, %arg1, %c0_i32 : i32, i32, i32
  }
  func.func @transform_1(%arg0: i32, %arg1: i32) -> (i32, i32) {
    %c0_i32 = arith.constant 0 : i32
    %c0_i32_0 = arith.constant 0 : i32
    %c0_i32_1 = arith.constant 0 : i32
    return %c0_i32, %c0_i32_0 : i32, i32
  }
  func.func @transform_2(%arg0: i32, %arg1: i32) -> (i32, i32) {
    %c0_i32 = arith.constant 0 : i32
    %c0_i32_0 = arith.constant 0 : i32
    %c0_i32_1 = arith.constant 0 : i32
    return %c0_i32, %c0_i32_0 : i32, i32
  }
  func.func @transform_3(%arg0: i32, %arg1: i32) -> (i32, i32, i32) {
    %c0_i32 = arith.constant 0 : i32
    %c0_i32_0 = arith.constant 0 : i32
    return %arg0, %arg1, %c0_i32 : i32, i32, i32
  }
  func.func @transform_4(%arg0: i32, %arg1: i32) -> (i32, i32, i32) {
    %c0_i32 = arith.constant 0 : i32
    %c0_i32_0 = arith.constant 0 : i32
    return %arg0, %arg1, %c0_i32 : i32, i32, i32
  }
}

</mosaic_0001>

<llo_original>
// kernel: tpu_custom_call.1
$region0: #{tpu_custom_call.1}
  #allocation0 [shape = 'u32[]', space=smem, size = 0x4, offset = 0x4, fixed_abs, tag = 'smem constant byte address 0x4 - core index']
  #allocation1 [shape = 'u32[72,128]{1,0:T(1,128)}', space=vmem, size = 0x9000, scoped, tag = 'internal scratch']
  #allocation2 [shape = 'f32[1,1]{1,0:T(1,128)S(6)}', space=smem, size = 0x200, scoped, tag = 'scoped memory for tpu_custom_call.1']
  %s0 = inlined_call_operand.vmem [shape: f32[2,128,32], index: 0, kind: input, shape index: {}]
  %s1 = inlined_call_operand.vmem [shape: f32[1,32], index: 1, kind: input, shape index: {}]
  %s2 = inlined_call_operand.<no memory space> [shape: f32[1,1], index: 2, kind: input, shape index: {}]
  %s3 = inlined_call_operand.vmem [shape: bf16[2,128,32], index: 3, kind: output, shape index: {0}]
  %s4 = inlined_call_operand.vmem [shape: f32[2,128,1], index: 4, kind: output, shape index: {1}]
  %5 = xla_tuple %s3, %s4
  %s6 = sld [smem:[#allocation0]]
  $region53: #{tpu_custom_call.1} parent=0
    _
  %s8 = ssub.s32 1, %s6
  %s9 = scalar_select 0, %s8, %s6
  %10 = sst [smem:[#allocation2]] %s2
  loop: start=0, step=1, limit=4
  $region2: #{tpu_custom_call.1} parent=0 // loop_pre_header
    _
  $region3: #{tpu_custom_call.1} parent=0 // loop_header
    %s12 = sphi 0, %s16
    %p13 = scmp.ge.s32.totalorder %s12, 4
    %s19 = sphi 0, %s31
    %s20 = sphi 0, %s27
    %s21 = sphi 0, %s19
    %s22 = sphi 0, %s20
    %s23 = sphi 0, %s21
    %s24 = sphi 0, %s22
    %s36 = sphi 0, %s38
    %s39 = sphi 0, %s36
    %s40 = sphi 0, %s39
    %s56 = sphi 0, %s40
    %s60 = sphi 0, %s60
    %s62 = sphi 0, %s60
    %s63 = sphi 0, %s62
    %s77 = sphi 0, %s63
    %s81 = sphi 0, %s81
    %s83 = sphi 0, %s81
    %s84 = sphi 0, %s83
    %s98 = sphi 0, %s84
    %s106 = sphi 0, %s108
    %s109 = sphi 0, %s106
    %s110 = sphi 0, %s109
    %s126 = sphi 0, %s110
    %s134 = sphi 0, %s136
    %s137 = sphi 0, %s134
    %s138 = sphi 0, %s137
    %s154 = sphi 0, %s138
  $region4: #{tpu_custom_call.1} parent=0 // loop_header_branch
    %15 = sbr.rel (%p13) target = $region8
  $region5: #{tpu_custom_call.1} parent=0 // loop_body
    %s17 = ssub.s32 %s12, 1
    %s18 = ssub.s32 %s12, 2
    %s25 = sadd.s32 1, %s20
    %p26 = scmp.ge.s32.totalorder %s25, 1
    %s27 = scalar_select %p26, 0, %s25
    %s28 = sadd.s32 1, %s19
    %s29 = scalar_select %p26, %s28, %s19
    %p30 = scmp.ge.s32.totalorder %s29, 2
    %s31 = scalar_select %p30, 0, %s29
    %s32 = ssub.s32 %s19, %s31
    %s33 = ssub.s32 %s20, %s27
    %s34 = sor.u32 %s32, %s33
    %p35 = scmp.eq.s32.totalorder %s34, 0
    %s37 = sadd.s32 %s36, 1
    %s38 = scalar_select %p35, %s36, %s37
    %p41 = pneg %p35
    %p42 = scmp.eq.s32.totalorder %s12, 1
    %p43 = por %p41, %p42
    %p44 = scmp.ne.s32.totalorder %s36, %s39
    %p45 = scmp.eq.s32.totalorder %s12, 0
    %p46 = por %p44, %p45
    %p47 = scmp.ne.s32.totalorder %s36, %s39
    %p48 = scmp.eq.s32.totalorder %s17, 1
    %p49 = por %p47, %p48
    %p50 = scmp.ne.s32.totalorder %s39, %s40
    %p51 = scmp.eq.s32.totalorder %s17, 0
    %p52 = por %p50, %p51
    %p53 = scmp.ne.s32.totalorder %s39, %s40
    %p54 = scmp.eq.s32.totalorder %s18, 1
    %p55 = por %p53, %p54
    %p57 = scmp.ne.s32.totalorder %s40, %s56
    %p58 = scmp.eq.s32.totalorder %s18, 0
    %p59 = por %p57, %p58
    %s61 = sadd.s32 %s60, 1
    %p64 = scmp.eq.s32.totalorder %s12, 1
    %p65 = scmp.ne.s32.totalorder %s60, %s62
    %p66 = scmp.eq.s32.totalorder %s12, 0
    %p67 = por %p65, %p66
    %p68 = scmp.ne.s32.totalorder %s60, %s62
    %p69 = scmp.eq.s32.totalorder %s17, 1
    %p70 = por %p68, %p69
    %p71 = scmp.ne.s32.totalorder %s62, %s63
    %p72 = scmp.eq.s32.totalorder %s17, 0
    %p73 = por %p71, %p72
    %p74 = scmp.ne.s32.totalorder %s62, %s63
    %p75 = scmp.eq.s32.totalorder %s18, 1
    %p76 = por %p74, %p75
    %p78 = scmp.ne.s32.totalorder %s63, %s77
    %p79 = scmp.eq.s32.totalorder %s18, 0
    %p80 = por %p78, %p79
    %s82 = sadd.s32 %s81, 1
    %p85 = scmp.eq.s32.totalorder %s12, 1
    %p86 = scmp.ne.s32.totalorder %s81, %s83
    %p87 = scmp.eq.s32.totalorder %s12, 0
    %p88 = por %p86, %p87
    %p89 = scmp.ne.s32.totalorder %s81, %s83
    %p90 = scmp.eq.s32.totalorder %s17, 1
    %p91 = por %p89, %p90
    %p92 = scmp.ne.s32.totalorder %s83, %s84
    %p93 = scmp.eq.s32.totalorder %s17, 0
    %p94 = por %p92, %p93
    %p95 = scmp.ne.s32.totalorder %s83, %s84
    %p96 = scmp.eq.s32.totalorder %s18, 1
    %p97 = por %p95, %p96
    %p99 = scmp.ne.s32.totalorder %s84, %s98
    %p100 = scmp.eq.s32.totalorder %s18, 0
    %p101 = por %p99, %p100
    %s102 = ssub.s32 %s19, %s31
    %s103 = ssub.s32 %s20, %s27
    %s104 = sor.u32 %s102, %s103
    %p105 = scmp.eq.s32.totalorder %s104, 0
    %s107 = sadd.s32 %s106, 1
    %s108 = scalar_select %p105, %s106, %s107
    %p111 = pneg %p105
    %p112 = scmp.eq.s32.totalorder %s12, 1
    %p113 = por %p111, %p112
    %p114 = scmp.ne.s32.totalorder %s106, %s109
    %p115 = scmp.eq.s32.totalorder %s12, 0
    %p116 = por %p114, %p115
    %p117 = scmp.ne.s32.totalorder %s106, %s109
    %p118 = scmp.eq.s32.totalorder %s17, 1
    %p119 = por %p117, %p118
    %p120 = scmp.ne.s32.totalorder %s109, %s110
    %p121 = scmp.eq.s32.totalorder %s17, 0
    %p122 = por %p120, %p121
    %p123 = scmp.ne.s32.totalorder %s109, %s110
    %p124 = scmp.eq.s32.totalorder %s18, 1
    %p125 = por %p123, %p124
    %p127 = scmp.ne.s32.totalorder %s110, %s126
    %p128 = scmp.eq.s32.totalorder %s18, 0
    %p129 = por %p127, %p128
    %s130 = ssub.s32 %s19, %s31
    %s131 = ssub.s32 %s20, %s27
    %s132 = sor.u32 %s130, %s131
    %p133 = scmp.eq.s32.totalorder %s132, 0
    %s135 = sadd.s32 %s134, 1
    %s136 = scalar_select %p133, %s134, %s135
    %p139 = pneg %p133
    %p140 = scmp.eq.s32.totalorder %s12, 1
    %p141 = por %p139, %p140
    %p142 = scmp.ne.s32.totalorder %s134, %s137
    %p143 = scmp.eq.s32.totalorder %s12, 0
    %p144 = por %p142, %p143
    %p145 = scmp.ne.s32.totalorder %s134, %s137
    %p146 = scmp.eq.s32.totalorder %s17, 1
    %p147 = por %p145, %p146
    %p148 = scmp.ne.s32.totalorder %s137, %s138
    %p149 = scmp.eq.s32.totalorder %s17, 0
    %p150 = por %p148, %p149
    %p151 = scmp.ne.s32.totalorder %s137, %s138
    %p152 = scmp.eq.s32.totalorder %s18, 1
    %p153 = por %p151, %p152
    %p155 = scmp.ne.s32.totalorder %s138, %s154
    %p156 = scmp.eq.s32.totalorder %s18, 0
    %p157 = por %p155, %p156
    %p158 = scmp.le.s32.totalorder 1, %s12
    %p159 = scmp.lt.s32.totalorder %s12, 3
    %p160 = pnand %p158, %p159
    %p161 = pneg %p160
    // Predicated region
    $region9: #{tpu_custom_call.1} parent=5 // pred_check
      _
    $region10: #{tpu_custom_call.1} parent=5 // pred_check_branch
      %163 = sbr.rel (%p160) target = $region12
    $region11: #{tpu_custom_call.1} parent=5 // pred_region
      %s164 = ssub.s32 %s12, 1
      // Predicated region
      $region13: #{tpu_custom_call.1} parent=11 // pred_check
        %p165 = pneg %p73
      $region14: #{tpu_custom_call.1} parent=11 // pred_check_branch
        %167 = sbr.rel (%p165) target = $region16
      $region15: #{tpu_custom_call.1} parent=11 // pred_region
        _
      $region16: #{tpu_custom_call.1} parent=11 // pred_fallthru
        _
      // Predicated region
      $region17: #{tpu_custom_call.1} parent=11 // pred_check
        %p168 = pneg %p94
      $region18: #{tpu_custom_call.1} parent=11 // pred_check_branch
        %170 = sbr.rel (%p168) target = $region20
      $region19: #{tpu_custom_call.1} parent=11 // pred_region
        _
      $region20: #{tpu_custom_call.1} parent=11 // pred_fallthru
        _
    $region12: #{tpu_custom_call.1} parent=5 // pred_fallthru
      _
    %p171 = scmp.lt.s32.totalorder %s12, 2
    // Predicated region
    $region21: #{tpu_custom_call.1} parent=5 // pred_check
      %p172 = pneg %p171
    $region22: #{tpu_custom_call.1} parent=5 // pred_check_branch
      %174 = sbr.rel (%p172) target = $region24
    $region23: #{tpu_custom_call.1} parent=5 // pred_region
      // Predicated region
      $region25: #{tpu_custom_call.1} parent=23 // pred_check
        %p175 = pneg %p46
      $region26: #{tpu_custom_call.1} parent=23 // pred_check_branch
        %177 = sbr.rel (%p175) target = $region28
      $region27: #{tpu_custom_call.1} parent=23 // pred_region
        %s178 = smul.u32 16, %s20
        %p179 = scmp.lt.s32.totalorder %s19, 1
        %s180 = scalar_select %p179, %s19, 1
        %p181 = scmp.lt.s32.totalorder %s178, 15
        %s182 = scalar_select %p181, %s178, 15
        %s183 = smul.addr %s180, 16
        %s184 = sadd.s32 %s182, %s183
        %s185 = smul.addr %s184, 8
        %s186 = scalar_lea.vmem %s0, %s185
        %s187 = smul.u32 16, %s20
      $region28: #{tpu_custom_call.1} parent=23 // pred_fallthru
        _
    $region24: #{tpu_custom_call.1} parent=5 // pred_fallthru
      _
    %p188 = scmp.le.s32.totalorder 1, %s12
    %p189 = scmp.lt.s32.totalorder %s12, 3
    %p190 = pnand %p188, %p189
    %p191 = pneg %p190
    // Predicated region
    $region29: #{tpu_custom_call.1} parent=5 // pred_check
      _
    $region30: #{tpu_custom_call.1} parent=5 // pred_check_branch
      %193 = sbr.rel (%p190) target = $region32
    $region31: #{tpu_custom_call.1} parent=5 // pred_region
      %s194 = ssub.s32 %s12, 1
      %s195 = smul.u32 16, %s22
      %p196 = scmp.lt.s32.totalorder %s21, 1
      %s197 = scalar_select %p196, %s21, 1
      %p198 = scmp.lt.s32.totalorder %s195, 15
      %s199 = scalar_select %p198, %s195, 15
      %s200 = smul.addr %s197, 16
      %s201 = sadd.s32 %s199, %s200
      %s202 = smul.addr %s201, 8
      %s203 = scalar_lea.vmem %s0, %s202
      %p204 = pneg %p52
      %p205 = pneg %p49
      %p206 = pneg %p73
      %p207 = pneg %p70
      %p208 = pneg %p94
      %p209 = pneg %p91
      %p210 = pneg %p122
      %p211 = pneg %p119
      %s212 = smul.u32 16, %s22
      %p213 = scmp.lt.s32.totalorder %s21, 1
      %s214 = scalar_select %p213, %s21, 1
      %p215 = scmp.lt.s32.totalorder %s212, 15
      %s216 = scalar_select %p215, %s212, 15
      %s217 = smul.addr %s214, 16
      %s218 = sadd.s32 %s216, %s217
      %s219 = smul.addr %s218, 4
      %s220 = scalar_lea.vmem %s3, %s219
      %p221 = pneg %p150
      %p222 = pneg %p147
      %s223 = smul.u32 16, %s22
      %p224 = scmp.lt.s32.totalorder %s21, 1
      %s225 = scalar_select %p224, %s21, 1
      %p226 = scmp.lt.s32.totalorder %s223, 15
      %s227 = scalar_select %p226, %s223, 15
      %s228 = smul.addr %s225, 16
      %s229 = sadd.s32 %s227, %s228
      %s230 = smul.addr %s229, 8
      %s231 = scalar_lea.vmem %s4, %s230
      %s232 = smul.u32 16, %s22
      %p233 = scmp.lt.s32.totalorder %s21, 1
      %s234 = scalar_select %p233, %s21, 1
      %p235 = scmp.lt.s32.totalorder %s232, 15
      %s236 = scalar_select %p235, %s232, 15
      %s237 = smul.addr %s234, 16
      %s238 = sadd.s32 %s236, %s237
      %s239 = smul.addr %s238, 8
      %s240 = scalar_lea.vmem %s0, %s239
      %s241 = smul.u32 16, %s22
      %s242 = smul.u32 16, %s22
      %p243 = scmp.lt.s32.totalorder %s21, 1
      %s244 = scalar_select %p243, %s21, 1
      %p245 = scmp.lt.s32.totalorder %s242, 15
      %s246 = scalar_select %p245, %s242, 15
      %s247 = smul.addr %s244, 16
      %s248 = sadd.s32 %s246, %s247
      %s249 = smul.addr %s248, 4
      %s250 = scalar_lea.vmem %s3, %s249
      %s251 = smul.u32 16, %s22
      %s252 = smul.u32 16, %s22
      %p253 = scmp.lt.s32.totalorder %s21, 1
      %s254 = scalar_select %p253, %s21, 1
      %p255 = scmp.lt.s32.totalorder %s252, 15
      %s256 = scalar_select %p255, %s252, 15
      %s257 = smul.addr %s254, 16
      %s258 = sadd.s32 %s256, %s257
      %s259 = smul.addr %s258, 8
      %s260 = scalar_lea.vmem %s4, %s259
      %s261 = smul.u32 16, %s22
      %v262 = vld [vmem:[%s240] sm:$0xff]
      %v263 = vld [vmem:[%s240 + $0x8] sm:$0xff]
      %v264 = vld [vmem:[%s240 + $0x10] sm:$0xff]
      %v265 = vld [vmem:[%s240 + $0x18] sm:$0xff]
      %v266 = vld [vmem:[%s240 + $0x20] sm:$0xff]
      %v267 = vld [vmem:[%s240 + $0x28] sm:$0xff]
      %v268 = vld [vmem:[%s240 + $0x30] sm:$0xff]
      %v269 = vld [vmem:[%s240 + $0x38] sm:$0xff]
      %v270 = vld [vmem:[%s240 + $0x40] sm:$0xff]
      %v271 = vld [vmem:[%s240 + $0x48] sm:$0xff]
      %v272 = vld [vmem:[%s240 + $0x50] sm:$0xff]
      %v273 = vld [vmem:[%s240 + $0x58] sm:$0xff]
      %v274 = vld [vmem:[%s240 + $0x60] sm:$0xff]
      %v275 = vld [vmem:[%s240 + $0x68] sm:$0xff]
      %v276 = vld [vmem:[%s240 + $0x70] sm:$0xff]
      %v277 = vld [vmem:[%s240 + $0x78] sm:$0xff]
      %v278 = vld [vmem:[%s1] sm:$0x1]
      %v280 = vperm.slane %v278, 0
      %v282 = vmul.f32 %v262, %v280
      %v283 = vmul.f32 %v263, %v280
      %v284 = vmul.f32 %v264, %v280
      %v285 = vmul.f32 %v265, %v280
      %v286 = vmul.f32 %v266, %v280
      %v287 = vmul.f32 %v267, %v280
      %v288 = vmul.f32 %v268, %v280
      %v289 = vmul.f32 %v269, %v280
      %v290 = vmul.f32 %v270, %v280
      %v291 = vmul.f32 %v271, %v280
      %v292 = vmul.f32 %v272, %v280
      %v293 = vmul.f32 %v273, %v280
      %v294 = vmul.f32 %v274, %v280
      %v295 = vmul.f32 %v275, %v280
      %v296 = vmul.f32 %v276, %v280
      %v297 = vmul.f32 %v277, %v280
      %vm298 = vcmask 261120
      %v299 = vsel %vm298, %v282, 0.0
      %300 = vadd.xlane.f32.xlu0 %v299
      %v301 = vpop.xlane.xlu0 %300
      %v302 = vsel %vm298, %v283, 0.0
      %303 = vadd.xlane.f32.xlu0 %v302
      %v304 = vpop.xlane.xlu0 %303
      %v305 = vsel %vm298, %v284, 0.0
      %306 = vadd.xlane.f32.xlu0 %v305
      %v307 = vpop.xlane.xlu0 %306
      %v308 = vsel %vm298, %v285, 0.0
      %309 = vadd.xlane.f32.xlu0 %v308
      %v310 = vpop.xlane.xlu0 %309
      %v311 = vsel %vm298, %v286, 0.0
      %312 = vadd.xlane.f32.xlu0 %v311
      %v313 = vpop.xlane.xlu0 %312
      %v314 = vsel %vm298, %v287, 0.0
      %315 = vadd.xlane.f32.xlu0 %v314
      %v316 = vpop.xlane.xlu0 %315
      %v317 = vsel %vm298, %v288, 0.0
      %318 = vadd.xlane.f32.xlu0 %v317
      %v319 = vpop.xlane.xlu0 %318
      %v320 = vsel %vm298, %v289, 0.0
      %321 = vadd.xlane.f32.xlu0 %v320
      %v322 = vpop.xlane.xlu0 %321
      %v323 = vsel %vm298, %v290, 0.0
      %324 = vadd.xlane.f32.xlu0 %v323
      %v325 = vpop.xlane.xlu0 %324
      %v326 = vsel %vm298, %v291, 0.0
      %327 = vadd.xlane.f32.xlu0 %v326
      %v328 = vpop.xlane.xlu0 %327
      %v329 = vsel %vm298, %v292, 0.0
      %330 = vadd.xlane.f32.xlu0 %v329
      %v331 = vpop.xlane.xlu0 %330
      %v332 = vsel %vm298, %v293, 0.0
      %333 = vadd.xlane.f32.xlu0 %v332
      %v334 = vpop.xlane.xlu0 %333
      %v335 = vsel %vm298, %v294, 0.0
      %336 = vadd.xlane.f32.xlu0 %v335
      %v337 = vpop.xlane.xlu0 %336
      %v338 = vsel %vm298, %v295, 0.0
      %339 = vadd.xlane.f32.xlu0 %v338
      %v340 = vpop.xlane.xlu0 %339
      %v341 = vsel %vm298, %v296, 0.0
      %342 = vadd.xlane.f32.xlu0 %v341
      %v343 = vpop.xlane.xlu0 %342
      %v344 = vsel %vm298, %v297, 0.0
      %345 = vadd.xlane.f32.xlu0 %v344
      %v346 = vpop.xlane.xlu0 %345
      %s347 = sld [smem:[#allocation2]]
      %v348 = vstv %s347
      %v349 = vadd.f32 %v301, %v348
      %v350 = vadd.f32 %v304, %v348
      %v351 = vadd.f32 %v307, %v348
      %v352 = vadd.f32 %v310, %v348
      %v353 = vadd.f32 %v313, %v348
      %v354 = vadd.f32 %v316, %v348
      %v355 = vadd.f32 %v319, %v348
      %v356 = vadd.f32 %v322, %v348
      %v357 = vadd.f32 %v325, %v348
      %v358 = vadd.f32 %v328, %v348
      %v359 = vadd.f32 %v331, %v348
      %v360 = vadd.f32 %v334, %v348
      %v361 = vadd.f32 %v337, %v348
      %v362 = vadd.f32 %v340, %v348
      %v363 = vadd.f32 %v343, %v348
      %v364 = vadd.f32 %v346, %v348
      %v365 = vxor.u32 %v349, 2147483648
      %v366 = vxor.u32 %v350, 2147483648
      %v367 = vxor.u32 %v351, 2147483648
      %v368 = vxor.u32 %v352, 2147483648
      %v369 = vxor.u32 %v353, 2147483648
      %v370 = vxor.u32 %v354, 2147483648
      %v371 = vxor.u32 %v355, 2147483648
      %v372 = vxor.u32 %v356, 2147483648
      %v373 = vxor.u32 %v357, 2147483648
      %v374 = vxor.u32 %v358, 2147483648
      %v375 = vxor.u32 %v359, 2147483648
      %v376 = vxor.u32 %v360, 2147483648
      %v377 = vxor.u32 %v361, 2147483648
      %v378 = vxor.u32 %v362, 2147483648
      %v379 = vxor.u32 %v363, 2147483648
      %v380 = vxor.u32 %v364, 2147483648
      %v381 = vmul.f32 %v365, 1.442695
      %v382 = vpow.pop %v381
      %v383 = vmul.f32 %v366, 1.442695
      %v384 = vpow.pop %v383
      %v385 = vmul.f32 %v367, 1.442695
      %v386 = vpow.pop %v385
      %v387 = vmul.f32 %v368, 1.442695
      %v388 = vpow.pop %v387
      %v389 = vmul.f32 %v369, 1.442695
      %v390 = vpow.pop %v389
      %v391 = vmul.f32 %v370, 1.442695
      %v392 = vpow.pop %v391
      %v393 = vmul.f32 %v371, 1.442695
      %v394 = vpow.pop %v393
      %v395 = vmul.f32 %v372, 1.442695
      %v396 = vpow.pop %v395
      %v397 = vmul.f32 %v373, 1.442695
      %v398 = vpow.pop %v397
      %v399 = vmul.f32 %v374, 1.442695
      %v400 = vpow.pop %v399
      %v401 = vmul.f32 %v375, 1.442695
      %v402 = vpow.pop %v401
      %v403 = vmul.f32 %v376, 1.442695
      %v404 = vpow.pop %v403
      %v405 = vmul.f32 %v377, 1.442695
      %v406 = vpow.pop %v405
      %v407 = vmul.f32 %v378, 1.442695
      %v408 = vpow.pop %v407
      %v409 = vmul.f32 %v379, 1.442695
      %v410 = vpow.pop %v409
      %v411 = vmul.f32 %v380, 1.442695
      %v412 = vpow.pop %v411
      %v413 = vadd.f32 %v382, 1.0
      %v414 = vadd.f32 %v384, 1.0
      %v415 = vadd.f32 %v386, 1.0
      %v416 = vadd.f32 %v388, 1.0
      %v417 = vadd.f32 %v390, 1.0
      %v418 = vadd.f32 %v392, 1.0
      %v419 = vadd.f32 %v394, 1.0
      %v420 = vadd.f32 %v396, 1.0
      %v421 = vadd.f32 %v398, 1.0
      %v422 = vadd.f32 %v400, 1.0
      %v423 = vadd.f32 %v402, 1.0
      %v424 = vadd.f32 %v404, 1.0
      %v425 = vadd.f32 %v406, 1.0
      %v426 = vadd.f32 %v408, 1.0
      %v427 = vadd.f32 %v410, 1.0
      %v428 = vadd.f32 %v412, 1.0
      %v429 = vrcp.pop %v413
      %v430 = vmul.f32 %v413, %v429
      %v431 = vsub.f32 1.0, %v430
      %v432 = vmul.f32 %v429, %v431
      %v433 = vadd.f32 %v429, %v432
      %vm434 = vweird.f32 %v413
      %vm435 = vweird.f32 %v429
      %vm436 = vmor %vm434, %vm435
      %v437 = vsel %vm436, %v429, %v433
      %v438 = vand.u32 2147483647, %v413
      %vm439 = vcmp.eq.f32.partialorder %v438, 8.507059e+37
      %v440 = vand.u32 %v413, 2147483648
      %v441 = vor.u32 1.1754944e-38, %v440
      %v442 = vsel %vm439, %v441, %v437
      %v443 = vmul.f32 1.0, %v442
      %v444 = vrcp.pop %v414
      %v445 = vmul.f32 %v414, %v444
      %v446 = vsub.f32 1.0, %v445
      %v447 = vmul.f32 %v444, %v446
      %v448 = vadd.f32 %v444, %v447
      %vm449 = vweird.f32 %v414
      %vm450 = vweird.f32 %v444
      %vm451 = vmor %vm449, %vm450
      %v452 = vsel %vm451, %v444, %v448
      %v453 = vand.u32 2147483647, %v414
      %vm454 = vcmp.eq.f32.partialorder %v453, 8.507059e+37
      %v455 = vand.u32 %v414, 2147483648
      %v456 = vor.u32 1.1754944e-38, %v455
      %v457 = vsel %vm454, %v456, %v452
      %v458 = vmul.f32 1.0, %v457
      %v459 = vrcp.pop %v415
      %v460 = vmul.f32 %v415, %v459
      %v461 = vsub.f32 1.0, %v460
      %v462 = vmul.f32 %v459, %v461
      %v463 = vadd.f32 %v459, %v462
      %vm464 = vweird.f32 %v415
      %vm465 = vweird.f32 %v459
      %vm466 = vmor %vm464, %vm465
      %v467 = vsel %vm466, %v459, %v463
      %v468 = vand.u32 2147483647, %v415
      %vm469 = vcmp.eq.f32.partialorder %v468, 8.507059e+37
      %v470 = vand.u32 %v415, 2147483648
      %v471 = vor.u32 1.1754944e-38, %v470
      %v472 = vsel %vm469, %v471, %v467
      %v473 = vmul.f32 1.0, %v472
      %v474 = vrcp.pop %v416
      %v475 = vmul.f32 %v416, %v474
      %v476 = vsub.f32 1.0, %v475
      %v477 = vmul.f32 %v474, %v476
      %v478 = vadd.f32 %v474, %v477
      %vm479 = vweird.f32 %v416
      %vm480 = vweird.f32 %v474
      %vm481 = vmor %vm479, %vm480
      %v482 = vsel %vm481, %v474, %v478
      %v483 = vand.u32 2147483647, %v416
      %vm484 = vcmp.eq.f32.partialorder %v483, 8.507059e+37
      %v485 = vand.u32 %v416, 2147483648
      %v486 = vor.u32 1.1754944e-38, %v485
      %v487 = vsel %vm484, %v486, %v482
      %v488 = vmul.f32 1.0, %v487
      %v489 = vrcp.pop %v417
      %v490 = vmul.f32 %v417, %v489
      %v491 = vsub.f32 1.0, %v490
      %v492 = vmul.f32 %v489, %v491
      %v493 = vadd.f32 %v489, %v492
      %vm494 = vweird.f32 %v417
      %vm495 = vweird.f32 %v489
      %vm496 = vmor %vm494, %vm495
      %v497 = vsel %vm496, %v489, %v493
      %v498 = vand.u32 2147483647, %v417
      %vm499 = vcmp.eq.f32.partialorder %v498, 8.507059e+37
      %v500 = vand.u32 %v417, 2147483648
      %v501 = vor.u32 1.1754944e-38, %v500
      %v502 = vsel %vm499, %v501, %v497
      %v503 = vmul.f32 1.0, %v502
      %v504 = vrcp.pop %v418
      %v505 = vmul.f32 %v418, %v504
      %v506 = vsub.f32 1.0, %v505
      %v507 = vmul.f32 %v504, %v506
      %v508 = vadd.f32 %v504, %v507
      %vm509 = vweird.f32 %v418
      %vm510 = vweird.f32 %v504
      %vm511 = vmor %vm509, %vm510
      %v512 = vsel %vm511, %v504, %v508
      %v513 = vand.u32 2147483647, %v418
      %vm514 = vcmp.eq.f32.partialorder %v513, 8.507059e+37
      %v515 = vand.u32 %v418, 2147483648
      %v516 = vor.u32 1.1754944e-38, %v515
      %v517 = vsel %vm514, %v516, %v512
      %v518 = vmul.f32 1.0, %v517
      %v519 = vrcp.pop %v419
      %v520 = vmul.f32 %v419, %v519
      %v521 = vsub.f32 1.0, %v520
      %v522 = vmul.f32 %v519, %v521
      %v523 = vadd.f32 %v519, %v522
      %vm524 = vweird.f32 %v419
      %vm525 = vweird.f32 %v519
      %vm526 = vmor %vm524, %vm525
      %v527 = vsel %vm526, %v519, %v523
      %v528 = vand.u32 2147483647, %v419
      %vm529 = vcmp.eq.f32.partialorder %v528, 8.507059e+37
      %v530 = vand.u32 %v419, 2147483648
      %v531 = vor.u32 1.1754944e-38, %v530
      %v532 = vsel %vm529, %v531, %v527
      %v533 = vmul.f32 1.0, %v532
      %v534 = vrcp.pop %v420
      %v535 = vmul.f32 %v420, %v534
      %v536 = vsub.f32 1.0, %v535
      %v537 = vmul.f32 %v534, %v536
      %v538 = vadd.f32 %v534, %v537
      %vm539 = vweird.f32 %v420
      %vm540 = vweird.f32 %v534
      %vm541 = vmor %vm539, %vm540
      %v542 = vsel %vm541, %v534, %v538
      %v543 = vand.u32 2147483647, %v420
      %vm544 = vcmp.eq.f32.partialorder %v543, 8.507059e+37
      %v545 = vand.u32 %v420, 2147483648
      %v546 = vor.u32 1.1754944e-38, %v545
      %v547 = vsel %vm544, %v546, %v542
      %v548 = vmul.f32 1.0, %v547
      %v549 = vrcp.pop %v421
      %v550 = vmul.f32 %v421, %v549
      %v551 = vsub.f32 1.0, %v550
      %v552 = vmul.f32 %v549, %v551
      %v553 = vadd.f32 %v549, %v552
      %vm554 = vweird.f32 %v421
      %vm555 = vweird.f32 %v549
      %vm556 = vmor %vm554, %vm555
      %v557 = vsel %vm556, %v549, %v553
      %v558 = vand.u32 2147483647, %v421
      %vm559 = vcmp.eq.f32.partialorder %v558, 8.507059e+37
      %v560 = vand.u32 %v421, 2147483648
      %v561 = vor.u32 1.1754944e-38, %v560
      %v562 = vsel %vm559, %v561, %v557
      %v563 = vmul.f32 1.0, %v562
      %v564 = vrcp.pop %v422
      %v565 = vmul.f32 %v422, %v564
      %v566 = vsub.f32 1.0, %v565
      %v567 = vmul.f32 %v564, %v566
      %v568 = vadd.f32 %v564, %v567
      %vm569 = vweird.f32 %v422
      %vm570 = vweird.f32 %v564
      %vm571 = vmor %vm569, %vm570
      %v572 = vsel %vm571, %v564, %v568
      %v573 = vand.u32 2147483647, %v422
      %vm574 = vcmp.eq.f32.partialorder %v573, 8.507059e+37
      %v575 = vand.u32 %v422, 2147483648
      %v576 = vor.u32 1.1754944e-38, %v575
      %v577 = vsel %vm574, %v576, %v572
      %v578 = vmul.f32 1.0, %v577
      %v579 = vrcp.pop %v423
      %v580 = vmul.f32 %v423, %v579
      %v581 = vsub.f32 1.0, %v580
      %v582 = vmul.f32 %v579, %v581
      %v583 = vadd.f32 %v579, %v582
      %vm584 = vweird.f32 %v423
      %vm585 = vweird.f32 %v579
      %vm586 = vmor %vm584, %vm585
      %v587 = vsel %vm586, %v579, %v583
      %v588 = vand.u32 2147483647, %v423
      %vm589 = vcmp.eq.f32.partialorder %v588, 8.507059e+37
      %v590 = vand.u32 %v423, 2147483648
      %v591 = vor.u32 1.1754944e-38, %v590
      %v592 = vsel %vm589, %v591, %v587
      %v593 = vmul.f32 1.0, %v592
      %v594 = vrcp.pop %v424
      %v595 = vmul.f32 %v424, %v594
      %v596 = vsub.f32 1.0, %v595
      %v597 = vmul.f32 %v594, %v596
      %v598 = vadd.f32 %v594, %v597
      %vm599 = vweird.f32 %v424
      %vm600 = vweird.f32 %v594
      %vm601 = vmor %vm599, %vm600
      %v602 = vsel %vm601, %v594, %v598
      %v603 = vand.u32 2147483647, %v424
      %vm604 = vcmp.eq.f32.partialorder %v603, 8.507059e+37
      %v605 = vand.u32 %v424, 2147483648
      %v606 = vor.u32 1.1754944e-38, %v605
      %v607 = vsel %vm604, %v606, %v602
      %v608 = vmul.f32 1.0, %v607
      %v609 = vrcp.pop %v425
      %v610 = vmul.f32 %v425, %v609
      %v611 = vsub.f32 1.0, %v610
      %v612 = vmul.f32 %v609, %v611
      %v613 = vadd.f32 %v609, %v612
      %vm614 = vweird.f32 %v425
      %vm615 = vweird.f32 %v609
      %vm616 = vmor %vm614, %vm615
      %v617 = vsel %vm616, %v609, %v613
      %v618 = vand.u32 2147483647, %v425
      %vm619 = vcmp.eq.f32.partialorder %v618, 8.507059e+37
      %v620 = vand.u32 %v425, 2147483648
      %v621 = vor.u32 1.1754944e-38, %v620
      %v622 = vsel %vm619, %v621, %v617
      %v623 = vmul.f32 1.0, %v622
      %v624 = vrcp.pop %v426
      %v625 = vmul.f32 %v426, %v624
      %v626 = vsub.f32 1.0, %v625
      %v627 = vmul.f32 %v624, %v626
      %v628 = vadd.f32 %v624, %v627
      %vm629 = vweird.f32 %v426
      %vm630 = vweird.f32 %v624
      %vm631 = vmor %vm629, %vm630
      %v632 = vsel %vm631, %v624, %v628
      %v633 = vand.u32 2147483647, %v426
      %vm634 = vcmp.eq.f32.partialorder %v633, 8.507059e+37
      %v635 = vand.u32 %v426, 2147483648
      %v636 = vor.u32 1.1754944e-38, %v635
      %v637 = vsel %vm634, %v636, %v632
      %v638 = vmul.f32 1.0, %v637
      %v639 = vrcp.pop %v427
      %v640 = vmul.f32 %v427, %v639
      %v641 = vsub.f32 1.0, %v640
      %v642 = vmul.f32 %v639, %v641
      %v643 = vadd.f32 %v639, %v642
      %vm644 = vweird.f32 %v427
      %vm645 = vweird.f32 %v639
      %vm646 = vmor %vm644, %vm645
      %v647 = vsel %vm646, %v639, %v643
      %v648 = vand.u32 2147483647, %v427
      %vm649 = vcmp.eq.f32.partialorder %v648, 8.507059e+37
      %v650 = vand.u32 %v427, 2147483648
      %v651 = vor.u32 1.1754944e-38, %v650
      %v652 = vsel %vm649, %v651, %v647
      %v653 = vmul.f32 1.0, %v652
      %v654 = vrcp.pop %v428
      %v655 = vmul.f32 %v428, %v654
      %v656 = vsub.f32 1.0, %v655
      %v657 = vmul.f32 %v654, %v656
      %v658 = vadd.f32 %v654, %v657
      %vm659 = vweird.f32 %v428
      %vm660 = vweird.f32 %v654
      %vm661 = vmor %vm659, %vm660
      %v662 = vsel %vm661, %v654, %v658
      %v663 = vand.u32 2147483647, %v428
      %vm664 = vcmp.eq.f32.partialorder %v663, 8.507059e+37
      %v665 = vand.u32 %v428, 2147483648
      %v666 = vor.u32 1.1754944e-38, %v665
      %v667 = vsel %vm664, %v666, %v662
      %v668 = vmul.f32 1.0, %v667
      %v669 = vmul.f32 %v443, %v262
      %v670 = vmul.f32 %v458, %v263
      %v671 = vmul.f32 %v473, %v264
      %v672 = vmul.f32 %v488, %v265
      %v673 = vmul.f32 %v503, %v266
      %v674 = vmul.f32 %v518, %v267
      %v675 = vmul.f32 %v533, %v268
      %v676 = vmul.f32 %v548, %v269
      %v677 = vmul.f32 %v563, %v270
      %v678 = vmul.f32 %v578, %v271
      %v679 = vmul.f32 %v593, %v272
      %v680 = vmul.f32 %v608, %v273
      %v681 = vmul.f32 %v623, %v274
      %v682 = vmul.f32 %v638, %v275
      %v683 = vmul.f32 %v653, %v276
      %v684 = vmul.f32 %v668, %v277
      %v685 = vpack.c.bf16 %v669, %v669
      %v686 = vpack.c.bf16 %v670, %v670
      %v687 = vpack.c.bf16 %v671, %v671
      %v688 = vpack.c.bf16 %v672, %v672
      %v689 = vpack.c.bf16 %v673, %v673
      %v690 = vpack.c.bf16 %v674, %v674
      %v691 = vpack.c.bf16 %v675, %v675
      %v692 = vpack.c.bf16 %v676, %v676
      %v693 = vpack.c.bf16 %v677, %v677
      %v694 = vpack.c.bf16 %v678, %v678
      %v695 = vpack.c.bf16 %v679, %v679
      %v696 = vpack.c.bf16 %v680, %v680
      %v697 = vpack.c.bf16 %v681, %v681
      %v698 = vpack.c.bf16 %v682, %v682
      %v699 = vpack.c.bf16 %v683, %v683
      %v700 = vpack.c.bf16 %v684, %v684
      %vm701 = vcmask 257024
      %702 = vst.msk [vmem:[%s250] sm:$0xf] %vm701, %v685
      %703 = vst.msk [vmem:[%s250 + $0x4] sm:$0xf] %vm701, %v686
      %704 = vst.msk [vmem:[%s250 + $0x8] sm:$0xf] %vm701, %v687
      %705 = vst.msk [vmem:[%s250 + $0xc] sm:$0xf] %vm701, %v688
      %706 = vst.msk [vmem:[%s250 + $0x10] sm:$0xf] %vm701, %v689
      %707 = vst.msk [vmem:[%s250 + $0x14] sm:$0xf] %vm701, %v690
      %708 = vst.msk [vmem:[%s250 + $0x18] sm:$0xf] %vm701, %v691
      %709 = vst.msk [vmem:[%s250 + $0x1c] sm:$0xf] %vm701, %v692
      %710 = vst.msk [vmem:[%s250 + $0x20] sm:$0xf] %vm701, %v693
      %711 = vst.msk [vmem:[%s250 + $0x24] sm:$0xf] %vm701, %v694
      %712 = vst.msk [vmem:[%s250 + $0x28] sm:$0xf] %vm701, %v695
      %713 = vst.msk [vmem:[%s250 + $0x2c] sm:$0xf] %vm701, %v696
      %714 = vst.msk [vmem:[%s250 + $0x30] sm:$0xf] %vm701, %v697
      %715 = vst.msk [vmem:[%s250 + $0x34] sm:$0xf] %vm701, %v698
      %716 = vst.msk [vmem:[%s250 + $0x38] sm:$0xf] %vm701, %v699
      %717 = vst.msk [vmem:[%s250 + $0x3c] sm:$0xf] %vm701, %v700
      %vm718 = vcmask 7168
      %719 = vst.msk [vmem:[%s260] sm:$0xff] %vm718, %v443
      %720 = vst.msk [vmem:[%s260 + $0x8] sm:$0xff] %vm718, %v458
      %721 = vst.msk [vmem:[%s260 + $0x10] sm:$0xff] %vm718, %v473
      %722 = vst.msk [vmem:[%s260 + $0x18] sm:$0xff] %vm718, %v488
      %723 = vst.msk [vmem:[%s260 + $0x20] sm:$0xff] %vm718, %v503
      %724 = vst.msk [vmem:[%s260 + $0x28] sm:$0xff] %vm718, %v518
      %725 = vst.msk [vmem:[%s260 + $0x30] sm:$0xff] %vm718, %v533
      %726 = vst.msk [vmem:[%s260 + $0x38] sm:$0xff] %vm718, %v548
      %727 = vst.msk [vmem:[%s260 + $0x40] sm:$0xff] %vm718, %v563
      %728 = vst.msk [vmem:[%s260 + $0x48] sm:$0xff] %vm718, %v578
      %729 = vst.msk [vmem:[%s260 + $0x50] sm:$0xff] %vm718, %v593
      %730 = vst.msk [vmem:[%s260 + $0x58] sm:$0xff] %vm718, %v608
      %731 = vst.msk [vmem:[%s260 + $0x60] sm:$0xff] %vm718, %v623
      %732 = vst.msk [vmem:[%s260 + $0x68] sm:$0xff] %vm718, %v638
      %733 = vst.msk [vmem:[%s260 + $0x70] sm:$0xff] %vm718, %v653
      %734 = vst.msk [vmem:[%s260 + $0x78] sm:$0xff] %vm718, %v668
      %s735 = smul.u32 16, %s22
      %p736 = scmp.lt.s32.totalorder %s21, 1
      %s737 = scalar_select %p736, %s21, 1
      %p738 = scmp.lt.s32.totalorder %s735, 15
      %s739 = scalar_select %p738, %s735, 15
      %s740 = smul.addr %s737, 16
      %s741 = sadd.s32 %s739, %s740
      %s742 = smul.addr %s741, 4
      %s743 = scalar_lea.vmem %s3, %s742
      %s744 = smul.u32 16, %s22
      %p745 = scmp.lt.s32.totalorder %s21, 1
      %s746 = scalar_select %p745, %s21, 1
      %p747 = scmp.lt.s32.totalorder %s744, 15
      %s748 = scalar_select %p747, %s744, 15
      %s749 = smul.addr %s746, 16
      %s750 = sadd.s32 %s748, %s749
      %s751 = smul.addr %s750, 8
      %s752 = scalar_lea.vmem %s4, %s751
      // Predicated region
      $region33: #{tpu_custom_call.1} parent=31 // pred_check
        %p753 = pneg %p119
      $region34: #{tpu_custom_call.1} parent=31 // pred_check_branch
        %755 = sbr.rel (%p753) target = $region36
      $region35: #{tpu_custom_call.1} parent=31 // pred_region
        %s756 = smul.u32 16, %s22
      $region36: #{tpu_custom_call.1} parent=31 // pred_fallthru
        _
      // Predicated region
      $region37: #{tpu_custom_call.1} parent=31 // pred_check
        %p757 = pneg %p147
      $region38: #{tpu_custom_call.1} parent=31 // pred_check_branch
        %759 = sbr.rel (%p757) target = $region40
      $region39: #{tpu_custom_call.1} parent=31 // pred_region
        %s760 = smul.u32 16, %s22
      $region40: #{tpu_custom_call.1} parent=31 // pred_fallthru
        _
    $region32: #{tpu_custom_call.1} parent=5 // pred_fallthru
      _
    %p761 = scmp.le.s32.totalorder 2, %s12
    // Predicated region
    $region41: #{tpu_custom_call.1} parent=5 // pred_check
      %p762 = pneg %p761
    $region42: #{tpu_custom_call.1} parent=5 // pred_check_branch
      %764 = sbr.rel (%p762) target = $region44
    $region43: #{tpu_custom_call.1} parent=5 // pred_region
      %s765 = ssub.s32 %s12, 2
      // Predicated region
      $region45: #{tpu_custom_call.1} parent=43 // pred_check
        %p766 = pneg %p125
      $region46: #{tpu_custom_call.1} parent=43 // pred_check_branch
        %768 = sbr.rel (%p766) target = $region48
      $region47: #{tpu_custom_call.1} parent=43 // pred_region
        %s769 = smul.u32 16, %s24
        %p770 = scmp.lt.s32.totalorder %s23, 1
        %s771 = scalar_select %p770, %s23, 1
        %p772 = scmp.lt.s32.totalorder %s769, 15
        %s773 = scalar_select %p772, %s769, 15
        %s774 = smul.addr %s771, 16
        %s775 = sadd.s32 %s773, %s774
        %s776 = smul.addr %s775, 4
        %s777 = scalar_lea.vmem %s3, %s776
      $region48: #{tpu_custom_call.1} parent=43 // pred_fallthru
        _
      // Predicated region
      $region49: #{tpu_custom_call.1} parent=43 // pred_check
        %p778 = pneg %p153
      $region50: #{tpu_custom_call.1} parent=43 // pred_check_branch
        %780 = sbr.rel (%p778) target = $region52
      $region51: #{tpu_custom_call.1} parent=43 // pred_region
        %s781 = smul.u32 16, %s24
        %p782 = scmp.lt.s32.totalorder %s23, 1
        %s783 = scalar_select %p782, %s23, 1
        %p784 = scmp.lt.s32.totalorder %s781, 15
        %s785 = scalar_select %p784, %s781, 15
        %s786 = smul.addr %s783, 16
        %s787 = sadd.s32 %s785, %s786
        %s788 = smul.addr %s787, 8
        %s789 = scalar_lea.vmem %s4, %s788
      $region52: #{tpu_custom_call.1} parent=43 // pred_fallthru
        _
    $region44: #{tpu_custom_call.1} parent=5 // pred_fallthru
      _
  $region6: #{tpu_custom_call.1} parent=0 // loop_footer
    %s16 = sadd.s32 1, %s12
  $region7: #{tpu_custom_call.1} parent=0 // loop_footer_branch
    %11 = sbr.rel target = $region3
  $region8: #{tpu_custom_call.1} parent=0 // loop_exit
    _

</llo_original>
